<compile_context>
chip_gen: v7x
topology: tpu7x:2x2x1
jax: 0.10.0
libtpu: 0.0.40
codegen_flags: <defaults>
</compile_context>

<pallas_src>
import jax
import jax.numpy as jnp
from jax.experimental import pallas as pl
from jax.experimental.pallas import tpu as pltpu

NEG_SLOPE = 0.01  # nn.LeakyReLU() default

# dot_general dimension numbers for "A @ B^T" (contract the last dim of both operands).
NT_DIM_NUMBERS = (((1,), (1,)), ((), ()))


def _round_up(n, m):
    return ((n + m - 1) // m) * m


def mlp_kernel(x_ref, w1_ref, b1_ref, w2_ref, b2_ref, w3_ref, b3_ref, o_ref):
    # x_ref: (TB, 4) f32 tile in the array's natural batch-major layout.
    xb = x_ref[...].astype(jnp.bfloat16)                      # bf16 MXU operand
    # ---- fc1 (feature-major): h[f, b] = sum_k w1[f, k] * x[b, k]; dropout = id ----
    h = jax.lax.dot_general(
        w1_ref[...], xb, dimension_numbers=NT_DIM_NUMBERS,
        preferred_element_type=jnp.float32)                   # (64, TB) f32
    h = h + b1_ref[...]                                       # (64, 1) lane broadcast
    h = jnp.maximum(h, NEG_SLOPE * h)                         # LeakyReLU (2 VPU ops)
    # ---- fc2: (64, 64) @ (64, TB); dropout = id; LeakyReLU ----
    h = jnp.dot(w2_ref[...], h.astype(jnp.bfloat16),
                preferred_element_type=jnp.float32)           # (64, TB) f32
    h = h + b2_ref[...]
    h = jnp.maximum(h, NEG_SLOPE * h)
    # ---- fc3 (64 -> 1) on the MXU; w3 zero-padded to (8, 64) so M is aligned ----
    zf = jnp.dot(w3_ref[...], h.astype(jnp.bfloat16),
                 preferred_element_type=jnp.float32)          # (8, TB), rows 1..7 == 0
    z = zf[0:1, :] + b3_ref[...]                              # (1, TB)
    # ---- Sigmoid: exp + approx reciprocal both land on the (otherwise idle) EUP ----
    o_ref[...] = pl.reciprocal(1.0 + jnp.exp(-z), approx=True).astype(o_ref.dtype)


def mlp_forward(x, params, *, block_b=16384):
    """x: (B, 4) float32 -> (B, 1) float32."""
    w1, b1, w2, b2, w3, b3 = params
    B = x.shape[0]
    tb = min(block_b, _round_up(B, 128))
    # Keep >= 2 grid steps when the batch is big enough to split, so the "parallel"
    # batch axis can be sharded across both TensorCores on v7x.
    if pl.cdiv(B, tb) == 1 and B > 256:
        tb = _round_up(pl.cdiv(B, 2), 128)
    g = pl.cdiv(B, tb)

    out = pl.pallas_call(
        mlp_kernel,
        out_shape=jax.ShapeDtypeStruct((1, B), jnp.float32),
        grid=(g,),
        in_specs=[
            pl.BlockSpec((tb, 4), lambda i: (i, 0)),       # x tile (pipelined, ragged tail OK)
            pl.BlockSpec(w1.shape, lambda i: (0, 0)),      # weights stay VMEM-resident
            pl.BlockSpec(b1.shape, lambda i: (0, 0)),
            pl.BlockSpec(w2.shape, lambda i: (0, 0)),
            pl.BlockSpec(b2.shape, lambda i: (0, 0)),
            pl.BlockSpec(w3.shape, lambda i: (0, 0)),
            pl.BlockSpec(b3.shape, lambda i: (0, 0)),
        ],
        out_specs=pl.BlockSpec((1, tb), lambda i: (0, i)),  # lane-dense output row
        compiler_params=pltpu.CompilerParams(
            dimension_semantics=("parallel",),
            # (TB, 4) x blocks are lane-padded in VMEM; budget above the default
            # scoped limits but safely under v7x's 64 MiB physical VMEM.
            vmem_limit_bytes=48 * 1024 * 1024,
        ),
    )(x, w1, b1, w2, b2, w3, b3)
    # (1, B) is contiguous; reshaping to the module's (B, 1) is a free bitcast.
    return out.reshape(B, 1)


def init_params(key):
    """nn.Linear-style U(-1/sqrt(fan_in), 1/sqrt(fan_in)) init; matmul weights in bf16."""
    def linear(k, fan_in, fan_out):
        kw, kb = jax.random.split(k)
        bound = 1.0 / (fan_in ** 0.5)
        w = jax.random.uniform(kw, (fan_out, fan_in), jnp.float32, -bound, bound)
        b = jax.random.uniform(kb, (fan_out, 1), jnp.float32, -bound, bound)
        return w, b

    k1, k2, k3 = jax.random.split(key, 3)
    w1, b1 = linear(k1, 4, 64)                    # (64, 4),  (64, 1)
    w2, b2 = linear(k2, 64, 64)                   # (64, 64), (64, 1)
    w3, b3 = linear(k3, 64, 1)                    # (1, 64),  (1, 1)
    # fc3 weight zero-padded to 8 rows -> sublane-aligned M for the in-kernel matmul.
    w3p = jnp.zeros((8, 64), jnp.float32).at[0].set(w3[0])
    return (w1.astype(jnp.bfloat16), b1,
            w2.astype(jnp.bfloat16), b2,
            w3p.astype(jnp.bfloat16), b3)


def reference_forward(x, params):
    """Pure-JAX f32 reference matching MLP.forward in eval() mode."""
    w1, b1, w2, b2, w3p, b3 = params
    w1 = w1.astype(jnp.float32)
    w2 = w2.astype(jnp.float32)
    w3 = w3p[0:1].astype(jnp.float32)             # (1, 64)
    h = x @ w1.T + b1.T
    h = jnp.where(h >= 0, h, NEG_SLOPE * h)
    h = h @ w2.T + b2.T
    h = jnp.where(h >= 0, h, NEG_SLOPE * h)
    z = h @ w3.T + b3.T
    return 1.0 / (1.0 + jnp.exp(-z))


if __name__ == "__main__":
    key = jax.random.PRNGKey(0)
    kx1, kx2, kx3, kp = jax.random.split(key, 4)
    params = init_params(kp)
    TOL = 2e-2  # bf16 matmul operands vs. f32 reference

    # Small single-tile case (matches the module's in_features=4).
    B = 8
    x = jax.random.normal(kx1, (B, 4), jnp.float32)
    out = mlp_forward(x, params)
    jax.block_until_ready(out)
    ref = reference_forward(x, params)
    assert out.shape == (B, 1), out.shape
    assert float(jnp.max(jnp.abs(out - ref))) < TOL, float(jnp.max(jnp.abs(out - ref)))

    # Multi-tile + ragged-tail case (B not a multiple of the tile size).
    B2 = 1500
    x2 = jax.random.normal(kx2, (B2, 4), jnp.float32)
    out2 = mlp_forward(x2, params, block_b=512)
    jax.block_until_ready(out2)
    ref2 = reference_forward(x2, params)
    assert out2.shape == (B2, 1), out2.shape
    assert float(jnp.max(jnp.abs(out2 - ref2))) < TOL, float(jnp.max(jnp.abs(out2 - ref2)))

    # Default tile + ">= 2 grid steps" split path (exercises the v7x megacore rule).
    B3 = 2000
    x3 = jax.random.normal(kx3, (B3, 4), jnp.float32)
    out3 = mlp_forward(x3, params)
    jax.block_until_ready(out3)
    ref3 = reference_forward(x3, params)
    assert out3.shape == (B3, 1), out3.shape
    assert float(jnp.max(jnp.abs(out3 - ref3))) < TOL, float(jnp.max(jnp.abs(out3 - ref3)))

    print("KERNEL_OK")
</pallas_src>

<mosaic_0001>
module attributes {stable_mosaic.version = 11 : i64} {
  func.func @mlp_kernel(%arg0: i32, %arg1: memref<128x4xf32, #tpu.memory_space<vmem>>, %arg2: memref<64x4xbf16, #tpu.memory_space<vmem>>, %arg3: memref<64x1xf32, #tpu.memory_space<vmem>>, %arg4: memref<64x64xbf16, #tpu.memory_space<vmem>>, %arg5: memref<64x1xf32, #tpu.memory_space<vmem>>, %arg6: memref<8x64xbf16, #tpu.memory_space<vmem>>, %arg7: memref<1x1xf32, #tpu.memory_space<vmem>>, %arg8: memref<1x128xf32, #tpu.memory_space<vmem>>) attributes {dimension_semantics = [#tpu.dimension_semantics<parallel>], iteration_bounds = array<i64: 1>, scalar_prefetch = 0 : i64, scratch_operands = 0 : i64, tpu.core_type = #tpu.core_type<tc>, window_params = [{transform_indices = @transform_0, window_bounds = array<i64: 128, 4>}, {pipeline_mode = #tpu.pipeline_mode<synchronous>, transform_indices = @transform_1, window_bounds = array<i64: 64, 4>}, {pipeline_mode = #tpu.pipeline_mode<synchronous>, transform_indices = @transform_2, window_bounds = array<i64: 64, 1>}, {pipeline_mode = #tpu.pipeline_mode<synchronous>, transform_indices = @transform_3, window_bounds = array<i64: 64, 64>}, {pipeline_mode = #tpu.pipeline_mode<synchronous>, transform_indices = @transform_4, window_bounds = array<i64: 64, 1>}, {pipeline_mode = #tpu.pipeline_mode<synchronous>, transform_indices = @transform_5, window_bounds = array<i64: 8, 64>}, {pipeline_mode = #tpu.pipeline_mode<synchronous>, transform_indices = @transform_6, window_bounds = array<i64: 1, 1>}, {transform_indices = @transform_7, window_bounds = array<i64: 1, 128>}]} {
    %c0 = arith.constant 0 : index
    %c0_0 = arith.constant 0 : index
    %0 = vector.load %arg1[%c0, %c0_0] : memref<128x4xf32, #tpu.memory_space<vmem>>, vector<128x4xf32>
    %1 = arith.truncf %0 : vector<128x4xf32> to vector<128x4xbf16>
    %c0_1 = arith.constant 0 : index
    %c0_2 = arith.constant 0 : index
    %2 = vector.load %arg2[%c0_1, %c0_2] : memref<64x4xbf16, #tpu.memory_space<vmem>>, vector<64x4xbf16>
    %cst = arith.constant dense<0.000000e+00> : vector<64x128xf32>
    %3 = tpu.matmul %2, %1, %cst {dimension_numbers = #tpu.dot_dimension_numbers<[1], [1], [0], [0], [0, 0, 1, 0], [], []>} : vector<64x4xbf16>, vector<128x4xbf16>, vector<64x128xf32> -> vector<64x128xf32>
    %c0_3 = arith.constant 0 : index
    %c0_4 = arith.constant 0 : index
    %4 = vector.load %arg3[%c0_3, %c0_4] : memref<64x1xf32, #tpu.memory_space<vmem>>, vector<64x1xf32>
    %5 = vector.broadcast %4 : vector<64x1xf32> to vector<64x128xf32>
    %6 = arith.addf %3, %5 : vector<64x128xf32>
    %cst_5 = arith.constant 0.00999999977 : f32
    %7 = vector.broadcast %cst_5 : f32 to vector<64x128xf32>
    %8 = arith.mulf %7, %6 : vector<64x128xf32>
    %9 = arith.maximumf %6, %8 : vector<64x128xf32>
    %c0_6 = arith.constant 0 : index
    %c0_7 = arith.constant 0 : index
    %10 = vector.load %arg4[%c0_6, %c0_7] : memref<64x64xbf16, #tpu.memory_space<vmem>>, vector<64x64xbf16>
    %11 = arith.truncf %9 : vector<64x128xf32> to vector<64x128xbf16>
    %cst_8 = arith.constant dense<0.000000e+00> : vector<64x128xf32>
    %12 = tpu.matmul %10, %11, %cst_8 {dimension_numbers = #tpu.dot_dimension_numbers<[1], [0], [0], [1], [0, 0, 1, 1], [], []>} : vector<64x64xbf16>, vector<64x128xbf16>, vector<64x128xf32> -> vector<64x128xf32>
    %c0_9 = arith.constant 0 : index
    %c0_10 = arith.constant 0 : index
    %13 = vector.load %arg5[%c0_9, %c0_10] : memref<64x1xf32, #tpu.memory_space<vmem>>, vector<64x1xf32>
    %14 = vector.broadcast %13 : vector<64x1xf32> to vector<64x128xf32>
    %15 = arith.addf %12, %14 : vector<64x128xf32>
    %cst_11 = arith.constant 0.00999999977 : f32
    %16 = vector.broadcast %cst_11 : f32 to vector<64x128xf32>
    %17 = arith.mulf %16, %15 : vector<64x128xf32>
    %18 = arith.maximumf %15, %17 : vector<64x128xf32>
    %c0_12 = arith.constant 0 : index
    %c0_13 = arith.constant 0 : index
    %19 = vector.load %arg6[%c0_12, %c0_13] : memref<8x64xbf16, #tpu.memory_space<vmem>>, vector<8x64xbf16>
    %20 = arith.truncf %18 : vector<64x128xf32> to vector<64x128xbf16>
    %cst_14 = arith.constant dense<0.000000e+00> : vector<8x128xf32>
    %21 = tpu.matmul %19, %20, %cst_14 {dimension_numbers = #tpu.dot_dimension_numbers<[1], [0], [0], [1], [0, 0, 1, 1], [], []>} : vector<8x64xbf16>, vector<64x128xbf16>, vector<8x128xf32> -> vector<8x128xf32>
    %22 = vector.extract_strided_slice %21 {offsets = [0, 0], sizes = [1, 128], strides = [1, 1]} : vector<8x128xf32> to vector<1x128xf32>
    %c0_15 = arith.constant 0 : index
    %c0_16 = arith.constant 0 : index
    %23 = vector.load %arg7[%c0_15, %c0_16] : memref<1x1xf32, #tpu.memory_space<vmem>>, vector<1x1xf32>
    %24 = vector.broadcast %23 : vector<1x1xf32> to vector<1x128xf32>
    %25 = arith.addf %22, %24 : vector<1x128xf32>
    %cst_17 = arith.constant 0.000000e+00 : f32
    %26 = vector.broadcast %cst_17 : f32 to vector<1x128xf32>
    %27 = arith.subf %26, %25 : vector<1x128xf32>
    %28 = math.exp %27 : vector<1x128xf32>
    %cst_18 = arith.constant 1.000000e+00 : f32
    %29 = vector.broadcast %cst_18 : f32 to vector<1x128xf32>
    %30 = arith.addf %29, %28 : vector<1x128xf32>
    %31 = tpu.reciprocal %30 {approx = true} : vector<1x128xf32> -> vector<1x128xf32>
    %c0_19 = arith.constant 0 : index
    %c0_20 = arith.constant 0 : index
    %32 = vector.load %arg8[%c0_19, %c0_20] : memref<1x128xf32, #tpu.memory_space<vmem>>, vector<1x128xf32>
    tpu.vector_store %arg8[%c0_19, %c0_20], %31 {strides = array<i32>} : memref<1x128xf32, #tpu.memory_space<vmem>>, vector<1x128xf32>,
    return
  }
  func.func @transform_0(%arg0: i32) -> (i32, i32) {
    %c0_i32 = arith.constant 0 : i32
    %c0_i32_0 = arith.constant 0 : i32
    return %arg0, %c0_i32 : i32, i32
  }
  func.func @transform_1(%arg0: i32) -> (i32, i32) {
    %c0_i32 = arith.constant 0 : i32
    %c0_i32_0 = arith.constant 0 : i32
    %c0_i32_1 = arith.constant 0 : i32
    return %c0_i32, %c0_i32_0 : i32, i32
  }
  func.func @transform_2(%arg0: i32) -> (i32, i32) {
    %c0_i32 = arith.constant 0 : i32
    %c0_i32_0 = arith.constant 0 : i32
    %c0_i32_1 = arith.constant 0 : i32
    return %c0_i32, %c0_i32_0 : i32, i32
  }
  func.func @transform_3(%arg0: i32) -> (i32, i32) {
    %c0_i32 = arith.constant 0 : i32
    %c0_i32_0 = arith.constant 0 : i32
    %c0_i32_1 = arith.constant 0 : i32
    return %c0_i32, %c0_i32_0 : i32, i32
  }
  func.func @transform_4(%arg0: i32) -> (i32, i32) {
    %c0_i32 = arith.constant 0 : i32
    %c0_i32_0 = arith.constant 0 : i32
    %c0_i32_1 = arith.constant 0 : i32
    return %c0_i32, %c0_i32_0 : i32, i32
  }
  func.func @transform_5(%arg0: i32) -> (i32, i32) {
    %c0_i32 = arith.constant 0 : i32
    %c0_i32_0 = arith.constant 0 : i32
    %c0_i32_1 = arith.constant 0 : i32
    return %c0_i32, %c0_i32_0 : i32, i32
  }
  func.func @transform_6(%arg0: i32) -> (i32, i32) {
    %c0_i32 = arith.constant 0 : i32
    %c0_i32_0 = arith.constant 0 : i32
    %c0_i32_1 = arith.constant 0 : i32
    return %c0_i32, %c0_i32_0 : i32, i32
  }
  func.func @transform_7(%arg0: i32) -> (i32, i32) {
    %c0_i32 = arith.constant 0 : i32
    %c0_i32_0 = arith.constant 0 : i32
    return %c0_i32, %arg0 : i32, i32
  }
}

</mosaic_0001>

<llo_original>
// kernel: tpu_custom_call.1
$region0: #{tpu_custom_call.1}
  #allocation0 [shape = 'u32[]', space=smem, size = 0x4, offset = 0x4, fixed_abs, tag = 'smem constant byte address 0x4 - core index']
  #allocation1 [shape = 'u32[144,128]{1,0:T(1,128)}', space=vmem, size = 0x12000, scoped, tag = 'internal scratch']
  #allocation2 [shape = 'f32[1,1]{1,0:T(1,128)S(1)}', space=vmem, size = 0x200, scoped, tag = 'scoped memory for tpu_custom_call.1']
  %s0 = inlined_call_operand.vmem [shape: f32[8,4], index: 0, kind: input, shape index: {}]
  %s1 = inlined_call_operand.vmem [shape: bf16[64,4], index: 1, kind: input, shape index: {}]
  %s2 = inlined_call_operand.vmem [shape: f32[64,1], index: 2, kind: input, shape index: {}]
  %s3 = inlined_call_operand.vmem [shape: bf16[64,64], index: 3, kind: input, shape index: {}]
  %s4 = inlined_call_operand.vmem [shape: f32[64,1], index: 4, kind: input, shape index: {}]
  %s5 = inlined_call_operand.vmem [shape: bf16[8,64], index: 5, kind: input, shape index: {}]
  %s6 = inlined_call_operand.<no memory space> [shape: f32[1,1], index: 6, kind: input, shape index: {}]
  %s7 = inlined_call_operand.hbm [shape: f32[1,8], index: 7, kind: output, shape index: {}]
  %s8 = sld [smem:[#allocation0]]
  $region38: #{tpu_custom_call.1} parent=0
    _
  %s10 = ssub.s32 1, %s8
  %s11 = scalar_select 0, %s10, %s8
  %v12 = vstv %s6
  %13 = vst [vmem:[#allocation2] sm:$0x1] %v12
  $region1: #{tpu_custom_call.1} parent=0
    #allocation3 [shape = 'u8[512]{0}', space=vmem, size = 0x400, scoped, tag = 'output window, operand 0, single buffered']
    #allocation4 [shape = 's32[1]{0}', space=sflag, size = 0x4, scoped, tag = 'scoped memory for tpu_custom_call.1']
    %14 = vsyncpa [#allocation4], 0
    // Predicated region
    $region2: #{tpu_custom_call.1} parent=1 // pred_check
      _
    $region3: #{tpu_custom_call.1} parent=1 // pred_check_branch
      %16 = sbr.rel (0) target = $region5
    $region4: #{tpu_custom_call.1} parent=1 // pred_region
      _
    $region5: #{tpu_custom_call.1} parent=1 // pred_fallthru
      _
    // Predicated region
    $region6: #{tpu_custom_call.1} parent=1 // pred_check
      _
    $region7: #{tpu_custom_call.1} parent=1 // pred_check_branch
      %18 = sbr.rel (0) target = $region9
    $region8: #{tpu_custom_call.1} parent=1 // pred_region
      _
    $region9: #{tpu_custom_call.1} parent=1 // pred_fallthru
      _
    // Predicated region
    $region10: #{tpu_custom_call.1} parent=1 // pred_check
      _
    $region11: #{tpu_custom_call.1} parent=1 // pred_check_branch
      %20 = sbr.rel (0) target = $region13
    $region12: #{tpu_custom_call.1} parent=1 // pred_region
      _
    $region13: #{tpu_custom_call.1} parent=1 // pred_fallthru
      _
    // Predicated region
    $region14: #{tpu_custom_call.1} parent=1 // pred_check
      _
    $region15: #{tpu_custom_call.1} parent=1 // pred_check_branch
      %22 = sbr.rel (0) target = $region17
    $region16: #{tpu_custom_call.1} parent=1 // pred_region
      _
    $region17: #{tpu_custom_call.1} parent=1 // pred_fallthru
      _
    // Predicated region
    $region18: #{tpu_custom_call.1} parent=1 // pred_check
      _
    $region19: #{tpu_custom_call.1} parent=1 // pred_check_branch
      %24 = sbr.rel (0) target = $region21
    $region20: #{tpu_custom_call.1} parent=1 // pred_region
      _
    $region21: #{tpu_custom_call.1} parent=1 // pred_fallthru
      _
    // Predicated region
    $region22: #{tpu_custom_call.1} parent=1 // pred_check
      _
    $region23: #{tpu_custom_call.1} parent=1 // pred_check_branch
      %26 = sbr.rel (0) target = $region25
    $region24: #{tpu_custom_call.1} parent=1 // pred_region
      _
    $region25: #{tpu_custom_call.1} parent=1 // pred_fallthru
      _
    // Predicated region
    $region26: #{tpu_custom_call.1} parent=1 // pred_check
      _
    $region27: #{tpu_custom_call.1} parent=1 // pred_check_branch
      %28 = sbr.rel (0) target = $region29
    $region28: #{tpu_custom_call.1} parent=1 // pred_region
      _
    $region29: #{tpu_custom_call.1} parent=1 // pred_fallthru
      _
    %v30 = vld [vmem:[%s0] sm:$0xff]
    %v31 = vld [vmem:[%s0 + $0x8] sm:$0xff]
    %v32 = vld [vmem:[%s0 + $0x10] sm:$0xff]
    %v33 = vld [vmem:[%s0 + $0x18] sm:$0xff]
    %v34 = vld [vmem:[%s0 + $0x20] sm:$0xff]
    %v35 = vld [vmem:[%s0 + $0x28] sm:$0xff]
    %v36 = vld [vmem:[%s0 + $0x30] sm:$0xff]
    %v37 = vld [vmem:[%s0 + $0x38] sm:$0xff]
    %v38 = vld [vmem:[%s0 + $0x40] sm:$0xff]
    %v39 = vld [vmem:[%s0 + $0x48] sm:$0xff]
    %v40 = vld [vmem:[%s0 + $0x50] sm:$0xff]
    %v41 = vld [vmem:[%s0 + $0x58] sm:$0xff]
    %v42 = vld [vmem:[%s0 + $0x60] sm:$0xff]
    %v43 = vld [vmem:[%s0 + $0x68] sm:$0xff]
    %v44 = vld [vmem:[%s0 + $0x70] sm:$0xff]
    %v45 = vld [vmem:[%s0 + $0x78] sm:$0xff]
    %v46 = vpack.c.bf16 %v31, %v30
    %v47 = vpack.c.bf16 %v33, %v32
    %v48 = vpack.c.bf16 %v35, %v34
    %v49 = vpack.c.bf16 %v37, %v36
    %v50 = vpack.c.bf16 %v39, %v38
    %v51 = vpack.c.bf16 %v41, %v40
    %v52 = vpack.c.bf16 %v43, %v42
    %v53 = vpack.c.bf16 %v45, %v44
    %v54 = vld [vmem:[%s1] sm:$0xf]
    %v55 = vld [vmem:[%s1 + $0x4] sm:$0xf]
    %v56 = vld [vmem:[%s1 + $0x8] sm:$0xf]
    %v57 = vld [vmem:[%s1 + $0xc] sm:$0xf]
    %v58 = vld [vmem:[%s1 + $0x10] sm:$0xf]
    %v59 = vld [vmem:[%s1 + $0x14] sm:$0xf]
    %v60 = vld [vmem:[%s1 + $0x18] sm:$0xf]
    %v61 = vld [vmem:[%s1 + $0x1c] sm:$0xf]
    %v62 = vld [vmem:[%s2] sm:$0xff]
    %v63 = vld [vmem:[%s2 + $0x8] sm:$0xff]
    %v64 = vld [vmem:[%s2 + $0x10] sm:$0xff]
    %v65 = vld [vmem:[%s2 + $0x18] sm:$0xff]
    %v66 = vld [vmem:[%s2 + $0x20] sm:$0xff]
    %v67 = vld [vmem:[%s2 + $0x28] sm:$0xff]
    %v68 = vld [vmem:[%s2 + $0x30] sm:$0xff]
    %v69 = vld [vmem:[%s2 + $0x38] sm:$0xff]
    %71 = vset.pattern.permute.xlu0 0
    %72 = vperm.xlu0 %71, %v62
    %v73 = vpop.permute.xlu0 %72
    %76 = vset.pattern.permute.xlu0 0
    %77 = vperm.xlu0 %76, %v63
    %v78 = vpop.permute.xlu0 %77
    %81 = vset.pattern.permute.xlu0 0
    %82 = vperm.xlu0 %81, %v64
    %v83 = vpop.permute.xlu0 %82
    %86 = vset.pattern.permute.xlu0 0
    %87 = vperm.xlu0 %86, %v65
    %v88 = vpop.permute.xlu0 %87
    %91 = vset.pattern.permute.xlu0 0
    %92 = vperm.xlu0 %91, %v66
    %v93 = vpop.permute.xlu0 %92
    %96 = vset.pattern.permute.xlu0 0
    %97 = vperm.xlu0 %96, %v67
    %v98 = vpop.permute.xlu0 %97
    %101 = vset.pattern.permute.xlu0 0
    %102 = vperm.xlu0 %101, %v68
    %v103 = vpop.permute.xlu0 %102
    %106 = vset.pattern.permute.xlu0 0
    %107 = vperm.xlu0 %106, %v69
    %v108 = vpop.permute.xlu0 %107
    %v118 = vunpack.c.l.b16 %v54
    %v119 = vunpack.c.l.b16 %v55
    %v120 = vunpack.c.l.b16 %v56
    %v121 = vunpack.c.l.b16 %v57
    %v122 = vunpack.c.l.b16 %v58
    %v123 = vunpack.c.l.b16 %v59
    %v124 = vunpack.c.l.b16 %v60
    %v125 = vunpack.c.l.b16 %v61
    %v126 = vpack.c.b16 %v119, %v118
    %v127 = vpack.c.b16 %v121, %v120
    %v128 = vpack.c.b16 %v123, %v122
    %v129 = vpack.c.b16 %v125, %v124
    %vm130 = vcmask 31744
    %v132 = vsel %vm130, %v126, 0
    %v135 = vsel %vm130, %v127, 0
    %v138 = vsel %vm130, %v128, 0
    %v141 = vsel %vm130, %v129, 0
    %v144 = vsel %vm130, %v46, 0
    %v147 = vsel %vm130, %v47, 0
    %v150 = vsel %vm130, %v48, 0
    %v153 = vsel %vm130, %v49, 0
    %v156 = vsel %vm130, %v50, 0
    %v159 = vsel %vm130, %v51, 0
    %v162 = vsel %vm130, %v52, 0
    %v165 = vsel %vm130, %v53, 0
    %167 = vmatprep.subr.bf16.mxu0 0
    %168 = vmatpush1.bf16.xpose.msra.mxu0 %v144
    %169 = vmatprep.subr.bf16.mxu0 0
    %170 = vmatpush1.bf16.xpose.msra.mxu0 %v147
    %171 = vmatprep.subr.bf16.mxu0 0
    %172 = vmatpush1.bf16.xpose.msra.mxu0 %v150
    %173 = vmatprep.subr.bf16.mxu0 0
    %174 = vmatpush1.bf16.xpose.msra.mxu0 %v153
    %175 = vmatprep.subr.bf16.mxu0 0
    %176 = vmatpush1.bf16.xpose.msra.mxu0 %v156
    %177 = vmatprep.subr.bf16.mxu0 0
    %178 = vmatpush1.bf16.xpose.msra.mxu0 %v159
    %179 = vmatprep.subr.bf16.mxu0 0
    %180 = vmatpush1.bf16.xpose.msra.mxu0 %v162
    %181 = vmatprep.subr.bf16.mxu0 0
    %182 = vmatpush1.bf16.xpose.msra.mxu0 %v165
    %183 = vmatprep.subr.bf16.mxu0 0
    %184 = vmatpush1.bf16.xpose.msra.mxu0 0
    %185 = vmatprep.subr.bf16.mxu0 0
    %186 = vmatpush1.bf16.xpose.msra.mxu0 0
    %187 = vmatprep.subr.bf16.mxu0 0
    %188 = vmatpush1.bf16.xpose.msra.mxu0 0
    %189 = vmatprep.subr.bf16.mxu0 0
    %190 = vmatpush1.bf16.xpose.msra.mxu0 0
    %191 = vmatprep.subr.bf16.mxu0 0
    %192 = vmatpush1.bf16.xpose.msra.mxu0 0
    %193 = vmatprep.subr.bf16.mxu0 0
    %194 = vmatpush1.bf16.xpose.msra.mxu0 0
    %195 = vmatprep.subr.bf16.mxu0 0
    %196 = vmatpush1.bf16.xpose.msra.mxu0 0
    %197 = vmatprep.subr.bf16.mxu0 0
    %198 = vmatpush1.bf16.xpose.msra.mxu0 0
    %199 = vmatprep.mubr.bf16.mxu0 0
    %200 = vmatmul.mubr.bf16.gmra.mrb[0].mxu0 %v132
    %v201 = vpop.f32.mrb[0].mxu0
    %v202 = vadd.f32 %v73, %v201
    %v203 = vpop.f32.mrb[0].mxu0
    %v204 = vpop.f32.mrb[0].mxu0
    %v205 = vadd.f32 %v78, %v204
    %v206 = vpop.f32.mrb[0].mxu0
    %207 = vmatprep.mubr.bf16.mxu0 0
    %208 = vmatmul.mubr.bf16.gmra.mrb[0].mxu0 %v135
    %v209 = vpop.f32.mrb[0].mxu0
    %v210 = vadd.f32 %v83, %v209
    %v211 = vpop.f32.mrb[0].mxu0
    %v212 = vpop.f32.mrb[0].mxu0
    %v213 = vadd.f32 %v88, %v212
    %v214 = vpop.f32.mrb[0].mxu0
    %215 = vmatprep.mubr.bf16.mxu0 0
    %216 = vmatmul.mubr.bf16.gmra.mrb[0].mxu0 %v138
    %v217 = vpop.f32.mrb[0].mxu0
    %v218 = vadd.f32 %v93, %v217
    %v219 = vpop.f32.mrb[0].mxu0
    %v220 = vpop.f32.mrb[0].mxu0
    %v221 = vadd.f32 %v98, %v220
    %v222 = vpop.f32.mrb[0].mxu0
    %223 = vmatprep.mubr.bf16.mxu0 0
    %224 = vmatmul.mubr.bf16.gmra.mrb[0].mxu0 %v141
    %v225 = vpop.f32.mrb[0].mxu0
    %v226 = vadd.f32 %v103, %v225
    %v227 = vpop.f32.mrb[0].mxu0
    %v228 = vpop.f32.mrb[0].mxu0
    %v229 = vadd.f32 %v108, %v228
    %v230 = vpop.f32.mrb[0].mxu0
    %231 = vdwg.mxu0
    %v232 = vmul.f32 %v202, 0.01
    %v233 = vmul.f32 %v205, 0.01
    %v234 = vmul.f32 %v210, 0.01
    %v235 = vmul.f32 %v213, 0.01
    %v236 = vmul.f32 %v218, 0.01
    %v237 = vmul.f32 %v221, 0.01
    %v238 = vmul.f32 %v226, 0.01
    %v239 = vmul.f32 %v229, 0.01
    %v240 = vmax.f32 %v202, %v232
    %v241 = vmax.f32 %v205, %v233
    %v242 = vmax.f32 %v210, %v234
    %v243 = vmax.f32 %v213, %v235
    %v244 = vmax.f32 %v218, %v236
    %v245 = vmax.f32 %v221, %v237
    %v246 = vmax.f32 %v226, %v238
    %v247 = vmax.f32 %v229, %v239
    %v248 = vld [vmem:[%s3] sm:$0xf]
    %v249 = vld [vmem:[%s3 + $0x4] sm:$0xf]
    %v250 = vld [vmem:[%s3 + $0x8] sm:$0xf]
    %v251 = vld [vmem:[%s3 + $0xc] sm:$0xf]
    %v252 = vld [vmem:[%s3 + $0x10] sm:$0xf]
    %v253 = vld [vmem:[%s3 + $0x14] sm:$0xf]
    %v254 = vld [vmem:[%s3 + $0x18] sm:$0xf]
    %v255 = vld [vmem:[%s3 + $0x1c] sm:$0xf]
    %v256 = vpack.c.bf16 %v241, %v240
    %v257 = vpack.c.bf16 %v243, %v242
    %v258 = vpack.c.bf16 %v245, %v244
    %v259 = vpack.c.bf16 %v247, %v246
    %v260 = vld [vmem:[%s4] sm:$0xff]
    %v261 = vld [vmem:[%s4 + $0x8] sm:$0xff]
    %v262 = vld [vmem:[%s4 + $0x10] sm:$0xff]
    %v263 = vld [vmem:[%s4 + $0x18] sm:$0xff]
    %v264 = vld [vmem:[%s4 + $0x20] sm:$0xff]
    %v265 = vld [vmem:[%s4 + $0x28] sm:$0xff]
    %v266 = vld [vmem:[%s4 + $0x30] sm:$0xff]
    %v267 = vld [vmem:[%s4 + $0x38] sm:$0xff]
    %269 = vset.pattern.permute.xlu0 0
    %270 = vperm.xlu0 %269, %v260
    %v271 = vpop.permute.xlu0 %270
    %274 = vset.pattern.permute.xlu0 0
    %275 = vperm.xlu0 %274, %v261
    %v276 = vpop.permute.xlu0 %275
    %279 = vset.pattern.permute.xlu0 0
    %280 = vperm.xlu0 %279, %v262
    %v281 = vpop.permute.xlu0 %280
    %284 = vset.pattern.permute.xlu0 0
    %285 = vperm.xlu0 %284, %v263
    %v286 = vpop.permute.xlu0 %285
    %289 = vset.pattern.permute.xlu0 0
    %290 = vperm.xlu0 %289, %v264
    %v291 = vpop.permute.xlu0 %290
    %294 = vset.pattern.permute.xlu0 0
    %295 = vperm.xlu0 %294, %v265
    %v296 = vpop.permute.xlu0 %295
    %299 = vset.pattern.permute.xlu0 0
    %300 = vperm.xlu0 %299, %v266
    %v301 = vpop.permute.xlu0 %300
    %304 = vset.pattern.permute.xlu0 0
    %305 = vperm.xlu0 %304, %v267
    %v306 = vpop.permute.xlu0 %305
    %v316 = vunpack.c.l.b16 %v248
    %v317 = vunpack.c.l.b16 %v249
    %v318 = vunpack.c.l.b16 %v250
    %v319 = vunpack.c.l.b16 %v251
    %v320 = vunpack.c.l.b16 %v252
    %v321 = vunpack.c.l.b16 %v253
    %v322 = vunpack.c.l.b16 %v254
    %v323 = vunpack.c.l.b16 %v255
    %v324 = vpack.c.b16 %v317, %v316
    %v325 = vpack.c.b16 %v319, %v318
    %v326 = vpack.c.b16 %v321, %v320
    %v327 = vpack.c.b16 %v323, %v322
    %vm328 = vcmask 523264
    %v330 = vsel %vm328, %v324, 0
    %v333 = vsel %vm328, %v325, 0
    %v336 = vsel %vm328, %v326, 0
    %v339 = vsel %vm328, %v327, 0
    %341 = vmatprep.subr.bf16.mxu0 0
    %342 = vmatpush1.bf16.msra.mxu0 %v256
    %343 = vmatprep.subr.bf16.mxu0 0
    %344 = vmatpush1.bf16.msra.mxu0 %v257
    %345 = vmatprep.subr.bf16.mxu0 0
    %346 = vmatpush1.bf16.msra.mxu0 %v258
    %347 = vmatprep.subr.bf16.mxu0 0
    %348 = vmatpush1.bf16.msra.mxu0 %v259
    %349 = vmatprep.subr.bf16.mxu0 0
    %350 = vmatpush1.bf16.msra.mxu0 0
    %351 = vmatprep.subr.bf16.mxu0 0
    %352 = vmatpush1.bf16.msra.mxu0 0
    %353 = vmatprep.subr.bf16.mxu0 0
    %354 = vmatpush1.bf16.msra.mxu0 0
    %355 = vmatprep.subr.bf16.mxu0 0
    %356 = vmatpush1.bf16.msra.mxu0 0
    %357 = vmatprep.subr.bf16.mxu0 0
    %358 = vmatpush1.bf16.msra.mxu0 0
    %359 = vmatprep.subr.bf16.mxu0 0
    %360 = vmatpush1.bf16.msra.mxu0 0
    %361 = vmatprep.subr.bf16.mxu0 0
    %362 = vmatpush1.bf16.msra.mxu0 0
    %363 = vmatprep.subr.bf16.mxu0 0
    %364 = vmatpush1.bf16.msra.mxu0 0
    %365 = vmatprep.subr.bf16.mxu0 0
    %366 = vmatpush1.bf16.msra.mxu0 0
    %367 = vmatprep.subr.bf16.mxu0 0
    %368 = vmatpush1.bf16.msra.mxu0 0
    %369 = vmatprep.subr.bf16.mxu0 0
    %370 = vmatpush1.bf16.msra.mxu0 0
    %371 = vmatprep.subr.bf16.mxu0 0
    %372 = vmatpush1.bf16.msra.mxu0 0
    %373 = vmatprep.mubr.bf16.mxu0 0
    %374 = vmatmul.mubr.bf16.gmra.mrb[0].mxu0 %v330
    %v375 = vpop.f32.mrb[0].mxu0
    %v376 = vadd.f32 %v271, %v375
    %v377 = vpop.f32.mrb[0].mxu0
    %v378 = vpop.f32.mrb[0].mxu0
    %v379 = vadd.f32 %v276, %v378
    %v380 = vpop.f32.mrb[0].mxu0
    %381 = vmatprep.mubr.bf16.mxu0 0
    %382 = vmatmul.mubr.bf16.gmra.mrb[0].mxu0 %v333
    %v383 = vpop.f32.mrb[0].mxu0
    %v384 = vadd.f32 %v281, %v383
    %v385 = vpop.f32.mrb[0].mxu0
    %v386 = vpop.f32.mrb[0].mxu0
    %v387 = vadd.f32 %v286, %v386
    %v388 = vpop.f32.mrb[0].mxu0
    %389 = vmatprep.mubr.bf16.mxu0 0
    %390 = vmatmul.mubr.bf16.gmra.mrb[0].mxu0 %v336
    %v391 = vpop.f32.mrb[0].mxu0
    %v392 = vadd.f32 %v291, %v391
    %v393 = vpop.f32.mrb[0].mxu0
    %v394 = vpop.f32.mrb[0].mxu0
    %v395 = vadd.f32 %v296, %v394
    %v396 = vpop.f32.mrb[0].mxu0
    %397 = vmatprep.mubr.bf16.mxu0 0
    %398 = vmatmul.mubr.bf16.gmra.mrb[0].mxu0 %v339
    %v399 = vpop.f32.mrb[0].mxu0
    %v400 = vadd.f32 %v301, %v399
    %v401 = vpop.f32.mrb[0].mxu0
    %v402 = vpop.f32.mrb[0].mxu0
    %v403 = vadd.f32 %v306, %v402
    %v404 = vpop.f32.mrb[0].mxu0
    %405 = vdwg.mxu0
    %v406 = vmul.f32 %v376, 0.01
    %v407 = vmul.f32 %v379, 0.01
    %v408 = vmul.f32 %v384, 0.01
    %v409 = vmul.f32 %v387, 0.01
    %v410 = vmul.f32 %v392, 0.01
    %v411 = vmul.f32 %v395, 0.01
    %v412 = vmul.f32 %v400, 0.01
    %v413 = vmul.f32 %v403, 0.01
    %v414 = vmax.f32 %v376, %v406
    %v415 = vmax.f32 %v379, %v407
    %v416 = vmax.f32 %v384, %v408
    %v417 = vmax.f32 %v387, %v409
    %v418 = vmax.f32 %v392, %v410
    %v419 = vmax.f32 %v395, %v411
    %v420 = vmax.f32 %v400, %v412
    %v421 = vmax.f32 %v403, %v413
    %v422 = vld [vmem:[%s5] sm:$0xf]
    %v423 = vpack.c.bf16 %v415, %v414
    %v424 = vpack.c.bf16 %v417, %v416
    %v425 = vpack.c.bf16 %v419, %v418
    %v426 = vpack.c.bf16 %v421, %v420
    %v428 = vsel %vm328, %v422, 0
    %430 = vmatprep.subr.bf16.mxu0 0
    %431 = vmatpush1.bf16.msra.mxu0 %v423
    %432 = vmatprep.subr.bf16.mxu0 0
    %433 = vmatpush1.bf16.msra.mxu0 %v424
    %434 = vmatprep.subr.bf16.mxu0 0
    %435 = vmatpush1.bf16.msra.mxu0 %v425
    %436 = vmatprep.subr.bf16.mxu0 0
    %437 = vmatpush1.bf16.msra.mxu0 %v426
    %438 = vmatprep.subr.bf16.mxu0 0
    %439 = vmatpush1.bf16.msra.mxu0 0
    %440 = vmatprep.subr.bf16.mxu0 0
    %441 = vmatpush1.bf16.msra.mxu0 0
    %442 = vmatprep.subr.bf16.mxu0 0
    %443 = vmatpush1.bf16.msra.mxu0 0
    %444 = vmatprep.subr.bf16.mxu0 0
    %445 = vmatpush1.bf16.msra.mxu0 0
    %446 = vmatprep.subr.bf16.mxu0 0
    %447 = vmatpush1.bf16.msra.mxu0 0
    %448 = vmatprep.subr.bf16.mxu0 0
    %449 = vmatpush1.bf16.msra.mxu0 0
    %450 = vmatprep.subr.bf16.mxu0 0
    %451 = vmatpush1.bf16.msra.mxu0 0
    %452 = vmatprep.subr.bf16.mxu0 0
    %453 = vmatpush1.bf16.msra.mxu0 0
    %454 = vmatprep.subr.bf16.mxu0 0
    %455 = vmatpush1.bf16.msra.mxu0 0
    %456 = vmatprep.subr.bf16.mxu0 0
    %457 = vmatpush1.bf16.msra.mxu0 0
    %458 = vmatprep.subr.bf16.mxu0 0
    %459 = vmatpush1.bf16.msra.mxu0 0
    %460 = vmatprep.subr.bf16.mxu0 0
    %461 = vmatpush1.bf16.msra.mxu0 0
    %462 = vmatprep.mubr.bf16.mxu0 0
    %463 = vmatmul.mubr.bf16.gmra.mrb[0].mxu0 %v428
    %v464 = vpop.f32.mrb[0].mxu0
    %v465 = vadd.f32 0.0, %v464
    %v466 = vpop.f32.mrb[0].mxu0
    %v467 = vpop.f32.mrb[0].mxu0
    %v468 = vpop.f32.mrb[0].mxu0
    %469 = vdwg.mxu0
    %v470 = vld [vmem:[#allocation2] sm:$0x1]
    %472 = vset.pattern.permute.xlu0 0
    %473 = vperm.xlu0 %472, %v470
    %v474 = vpop.permute.xlu0 %473
    %v476 = vlaneseq
    %v477 = vshrl.u32 %v476, 7
    %v478 = vsub.s32 0, %v477
    %v479 = vrot.slane %v474, %v478
    %v480 = vadd.f32 %v465, %v479
    %v481 = vsub.f32 0.0, %v480
    %v482 = vmul.f32 %v481, 1.442695
    %v483 = vpow.pop %v482
    %v484 = vadd.f32 %v483, 1.0
    %v485 = vrcp.pop %v484
    %486 = vst [vmem:[#allocation3] sm:$0x1] %v485
    // Predicated region
    $region30: #{tpu_custom_call.1} parent=1 // pred_check
      _
    $region31: #{tpu_custom_call.1} parent=1 // pred_check_branch
      %488 = sbr.rel (0) target = $region33
    $region32: #{tpu_custom_call.1} parent=1 // pred_region
      %s490 = ssub.s32 16, 16
      %491 = vsyncadd [#allocation4], %s490
      %s493 = sshll.u32 [#allocation3], 4
      %s494 = int_to_ptr.vmem [resolvable:$true] %s493
      %496 = dma.vmem_to_hbm [thread:$0]  %s494, 16, %s7, [#allocation4]
    $region33: #{tpu_custom_call.1} parent=1 // pred_fallthru
      _
    // Predicated region
    $region34: #{tpu_custom_call.1} parent=1 // pred_check
      _
    $region35: #{tpu_custom_call.1} parent=1 // pred_check_branch
      %498 = sbr.rel (0) target = $region37
    $region36: #{tpu_custom_call.1} parent=1 // pred_region
      %499 = dma.done [#allocation4], 16
    $region37: #{tpu_custom_call.1} parent=1 // pred_fallthru
      _
    %500 = vsyncpa [#allocation4], 1

</llo_original>
